<compile_context>
chip_gen: v5e
topology: v5e:2x2
jax: 0.10.0
libtpu: 0.0.40
codegen_flags: <defaults>
</compile_context>

<pallas_src>
import math
import functools

import jax
import jax.numpy as jnp
from jax.experimental import pallas as pl
from jax.experimental.pallas import tpu as pltpu


def _pitch_kernel(x_ref, w1_ref, b1_ref, g1_ref, be1_ref,
                  w2_ref, b2_ref, wl2_ref, emb_ref, bl2_ref,
                  out_x_ref, out_p_ref,
                  *, K, max_pitch_log1p, beta, eps, fuse_limit, v_chunk):
    bb, T, E = x_ref.shape
    H = b1_ref.shape[1]
    V = emb_ref.shape[0]
    M = bb * T
    pad = (K - 1) // 2

    x = x_ref[...].reshape(M, E)          # (M, E) f32: batch+time flattened, channels on lanes

    # Time-within-sequence index for each flattened row, computed in-kernel (no HBM input).
    pos = jax.lax.broadcasted_iota(jnp.int32, (M, 1), 0) % T

    # Per-tap sequence-boundary masks, computed ONCE and shared by both conv layers.
    valid = {}
    for k in range(K):
        d = k - pad
        if d < 0:
            valid[d] = pos >= -d
        elif d > 0:
            valid[d] = pos < T - d

    def conv_taps(inp_f32, w_ref):
        """'same' Conv1d: roll+mask the input per tap (commutes with the row-wise matmul),
        then one fused (M, K*Cin)@(K*Cin, Cout) MXU pass when Cin is lane-aligned and
        below the MXU contraction width, else K per-tap matmuls.  Returns (M, Cout) f32."""
        cin = inp_f32.shape[1]
        taps = []
        for k in range(K):
            d = k - pad
            t = inp_f32
            if d != 0:
                # bring row (t + d) to row t: XLU sublane rotate, then zero rows whose
                # source would cross a sequence/batch boundary.
                t = pltpu.roll(t, shift=(-d) % M, axis=0)
                t = jnp.where(valid[d], t, 0.0)
            taps.append(t.astype(jnp.bfloat16))
        if cin % 128 == 0 and cin < fuse_limit:
            xcat = jnp.concatenate(taps, axis=-1)             # (M, K*cin) bf16
            return jnp.dot(xcat, w_ref[...], preferred_element_type=jnp.float32)
        acc = jnp.dot(taps[0], w_ref[0:cin, :], preferred_element_type=jnp.float32)
        for k in range(1, K):
            acc = acc + jnp.dot(taps[k], w_ref[k * cin:(k + 1) * cin, :],
                                preferred_element_type=jnp.float32)
        return acc

    # ---- layer 1: conv + bias -> ReLU -> LayerNorm (single-pass stats) + affine ----
    h = conv_taps(x, w1_ref) + b1_ref[...]
    h = jnp.maximum(h, 0.0)
    mean = jnp.sum(h, axis=-1, keepdims=True) * (1.0 / H)
    var = jnp.sum(h * h, axis=-1, keepdims=True) * (1.0 / H) - mean * mean
    h1 = (h - mean) * jax.lax.rsqrt(var + eps) * g1_ref[...] + be1_ref[...]

    # ---- layer 2: conv + bias -> ReLU; LN2 affine + Linear(H->1) folded into the reduce:
    #      pred = rsqrt(var+eps) * (h.wl' - mean*sum(wl')) + bl'   with wl' = g2*wl ----
    h = conv_taps(h1, w2_ref) + b2_ref[...]
    h = jnp.maximum(h, 0.0)
    mean = jnp.sum(h, axis=-1, keepdims=True) * (1.0 / H)
    var = jnp.sum(h * h, axis=-1, keepdims=True) * (1.0 / H) - mean * mean
    wl2 = wl2_ref[...]                                        # (1, H) = g2 * wl
    s_wl = jnp.sum(wl2, axis=-1, keepdims=True)               # (1, 1)
    dotv = jnp.sum(h * wl2, axis=-1, keepdims=True)           # (M, 1)
    pred = jax.lax.rsqrt(var + eps) * (dotv - mean * s_wl) + bl2_ref[0, 0]

    # ---- inference branch: log1p((exp(pred*maxp) - 1) * beta) / maxp, clamped to [0,1] ----
    a = jnp.minimum(pred * max_pitch_log1p, 80.0)             # f32-overflow guard (clips to 1 anyway)
    log_pitch = jnp.log1p((jnp.exp(a) - 1.0) * beta) / max_pitch_log1p
    log_pitch = jnp.clip(log_pitch, 0.0, 1.0)

    # torch.bucketize(v, linspace(0,1,V)) == ceil(v*(V-1)) for v in [0,1].
    idx = jnp.clip(jnp.ceil(log_pitch * (V - 1)), 0, V - 1).astype(jnp.int32)   # (M, 1)

    # ---- embedding lookup as chunked one-hot @ table (bounds (M, V) VMEM pressure) ----
    pitch = None
    for v0 in range(0, V, v_chunk):
        vc = min(v_chunk, V - v0)
        iota = jax.lax.broadcasted_iota(jnp.int32, (M, vc), 1) + v0
        onehot = (iota == idx).astype(jnp.bfloat16)
        part = jnp.dot(onehot, emb_ref[v0:v0 + vc, :],
                       preferred_element_type=jnp.float32)    # (M, E)
        pitch = part if pitch is None else pitch + part

    # Lane-dense main output (channels on lanes); pred kept as (bb, T, 1) (tiny vs out_x).
    out_x_ref[...] = (x + pitch).reshape(bb, T, E).astype(out_x_ref.dtype)
    out_p_ref[...] = pred.reshape(bb, T, 1).astype(out_p_ref.dtype)


def _full_spec(a):
    nd = a.ndim
    return pl.BlockSpec(a.shape, lambda i, _nd=nd: (0,) * _nd)


def _tpu_budget():
    """Generation-aware VMEM budget and block-size targets (v5e/v6e vs v7x)."""
    try:
        kind = jax.devices()[0].device_kind.lower()
    except Exception:
        kind = ""
    if ("v7" in kind) or ("7x" in kind) or ("tpu7" in kind):
        # v7x: 64 MiB VMEM/core, 2 TensorCores -> keep >=2 parallel grid steps when possible.
        return dict(vmem_limit=56 << 20, target_rows=4096, min_grid_steps=2)
    if ("v6" in kind) or ("v5" in kind):
        # v5e/v6e: 128 MiB VMEM, single TensorCore -> take one big block.
        return dict(vmem_limit=100 << 20, target_rows=8192, min_grid_steps=1)
    return dict(vmem_limit=48 << 20, target_rows=2048, min_grid_steps=1)


def _pick_batch_block(batch, T, E, H, V, K, *, target_rows, vmem_limit,
                      min_grid_steps, v_chunk):
    """Batch-block so M = bb*T is large (amortize ~0.35 us/step grid overhead) while the
    live working set stays well under the generation's VMEM budget."""
    bytes_per_row = (4 * E * 4               # x in + out_x blocks, f32, double-buffered
                     + 2 * K * max(E, H)     # rolled-tap slab, bf16 (worst layer)
                     + 4 * H * 3             # conv acc / h / h1 f32 working set
                     + 2 * H                 # h1 bf16
                     + 6 * min(V, v_chunk)   # one-hot chunk (i32 iota + bf16 one-hot)
                     + 4 * E + 32)           # pitch_embeds f32 + slack
    rows_cap = max(T, int(0.6 * vmem_limit) // max(bytes_per_row, 1))
    rows = max(T, min(target_rows, rows_cap))
    bb = max(1, min(batch, rows // max(T, 1)))
    if min_grid_steps > 1 and batch >= min_grid_steps:
        bb = min(bb, batch // min_grid_steps)   # keep both v7x TensorCores busy
    while batch % bb:                            # exact blocks only
        bb -= 1
    return bb


def pitch_predictor_forward(x, params, *, kernel_size, max_pitch, beta=1.0,
                            batch_block=None, eps=1e-5, fuse_limit=256, v_chunk=512):
    """x: (B, T, E) float32.  Returns (x + pitch_embeds) (B,T,E), pred_pitch (B,T)."""
    B, T, E = x.shape
    K = kernel_size
    H = params["b1"].shape[1]
    V = params["emb"].shape[0]
    max_pitch_log1p = math.log1p(float(max_pitch))

    budget = _tpu_budget()
    bb = batch_block if batch_block is not None else _pick_batch_block(
        B, T, E, H, V, K, target_rows=budget["target_rows"],
        vmem_limit=budget["vmem_limit"], min_grid_steps=budget["min_grid_steps"],
        v_chunk=v_chunk)
    assert B % bb == 0
    nblk = B // bb

    # MXU operands in bf16; everything elementwise stays f32 (v5e has no bf16 VPU/EUP).
    # Conv weights pre-flattened to (K*Cin, Cout) so taps can be fused into one matmul.
    w1c = params["w1"].reshape(K * E, H).astype(jnp.bfloat16)
    w2c = params["w2"].reshape(K * H, H).astype(jnp.bfloat16)
    emb = params["emb"].astype(jnp.bfloat16)
    # Fold LayerNorm-2's affine and the final Linear(H->1) host-side.
    wl2 = params["g2"] * params["wl"]                                           # (1, H)
    bl2 = params["bl"] + jnp.sum(params["be2"] * params["wl"], axis=-1,
                                 keepdims=True)                                 # (1, 1)

    kernel = functools.partial(
        _pitch_kernel, K=K, max_pitch_log1p=max_pitch_log1p, beta=float(beta),
        eps=eps, fuse_limit=fuse_limit, v_chunk=v_chunk)

    dense_inputs = (w1c, params["b1"], params["g1"], params["be1"],
                    w2c, params["b2"], wl2, emb)

    in_specs = [pl.BlockSpec((bb, T, E), lambda i: (i, 0, 0))]
    in_specs += [_full_spec(a) for a in dense_inputs]
    in_specs += [pl.BlockSpec(memory_space=pltpu.MemorySpace.SMEM)]   # bl2 scalar

    out_specs = [pl.BlockSpec((bb, T, E), lambda i: (i, 0, 0)),
                 pl.BlockSpec((bb, T, 1), lambda i: (i, 0, 0))]
    out_shape = (jax.ShapeDtypeStruct((B, T, E), x.dtype),
                 jax.ShapeDtypeStruct((B, T, 1), jnp.float32))

    out_x, pred = pl.pallas_call(
        kernel,
        grid=(nblk,),
        in_specs=in_specs,
        out_specs=out_specs,
        out_shape=out_shape,
        compiler_params=pltpu.CompilerParams(
            dimension_semantics=("parallel",),
            vmem_limit_bytes=budget["vmem_limit"]),
    )(x, *dense_inputs, bl2)

    return out_x, pred[..., 0]


def init_params(key, *, embed_dim, hidden_dim, kernel_size, pitch_vocab_size):
    ks = jax.random.split(key, 6)
    scale = 0.02
    # Conv1d weights stored as (K, in_ch, out_ch):  w[k] == torch_weight[:, :, k].T
    w1 = scale * jax.random.normal(ks[0], (kernel_size, embed_dim, hidden_dim), jnp.float32)
    b1 = scale * jax.random.normal(ks[1], (1, hidden_dim), jnp.float32)
    w2 = scale * jax.random.normal(ks[2], (kernel_size, hidden_dim, hidden_dim), jnp.float32)
    b2 = scale * jax.random.normal(ks[3], (1, hidden_dim), jnp.float32)
    wl = scale * jax.random.normal(ks[4], (1, hidden_dim), jnp.float32)   # Linear(H->1).weight
    bl = jnp.zeros((1, 1), jnp.float32)
    emb = scale * jax.random.normal(ks[5], (pitch_vocab_size, embed_dim), jnp.float32)
    return {
        "w1": w1, "b1": b1,
        "g1": jnp.ones((1, hidden_dim), jnp.float32),
        "be1": jnp.zeros((1, hidden_dim), jnp.float32),
        "w2": w2, "b2": b2,
        "g2": jnp.ones((1, hidden_dim), jnp.float32),
        "be2": jnp.zeros((1, hidden_dim), jnp.float32),
        "wl": wl, "bl": bl,
        "emb": emb,
    }


def _reference_forward(x, params, *, kernel_size, max_pitch, beta=1.0, eps=1e-5):
    """Pure-JAX reference mirroring the kernel's numerics (bf16 MXU operands, f32 math),
    but with the un-folded two-pass LayerNorm + explicit LN2/Linear (true module math)."""
    B, T, E = x.shape
    K = kernel_size
    pad = (K - 1) // 2
    maxp = math.log1p(float(max_pitch))

    def conv_relu_ln(h, w, b, g, be):
        hp = jnp.pad(h, ((0, 0), (pad, pad), (0, 0))).astype(jnp.bfloat16)
        w_bf = w.astype(jnp.bfloat16)
        acc = jnp.zeros((B, T, w.shape[2]), jnp.float32) + b
        for k in range(K):
            acc = acc + jnp.einsum("bte,eh->bth", hp[:, k:k + T, :], w_bf[k],
                                   preferred_element_type=jnp.float32)
        h = jnp.maximum(acc, 0.0)
        mean = jnp.mean(h, -1, keepdims=True)
        var = jnp.mean(jnp.square(h - mean), -1, keepdims=True)
        h = (h - mean) * jax.lax.rsqrt(var + eps)
        return h * g + be

    h1 = conv_relu_ln(x, params["w1"], params["b1"], params["g1"], params["be1"])
    h2 = conv_relu_ln(h1, params["w2"], params["b2"], params["g2"], params["be2"])
    pred = jnp.sum(h2 * params["wl"], axis=-1) + params["bl"][0, 0]          # (B, T)

    a = jnp.minimum(pred * maxp, 80.0)
    log_pitch = jnp.log1p((jnp.exp(a) - 1.0) * beta) / maxp
    log_pitch = jnp.clip(log_pitch, 0.0, 1.0)
    V = params["emb"].shape[0]
    idx = jnp.clip(jnp.ceil(log_pitch * (V - 1)), 0, V - 1).astype(jnp.int32)
    emb_q = params["emb"].astype(jnp.bfloat16).astype(jnp.float32)
    return x + emb_q[idx], pred


def _run_case(name, *, B, T, embed_dim, hidden_dim, kernel_size, pitch_vocab_size,
              max_pitch, beta, seed):
    key = jax.random.PRNGKey(seed)
    k_x, k_p = jax.random.split(key)
    x = jax.random.normal(k_x, (B, T, embed_dim), jnp.float32)
    params = init_params(k_p, embed_dim=embed_dim, hidden_dim=hidden_dim,
                         kernel_size=kernel_size, pitch_vocab_size=pitch_vocab_size)

    out_x, pred_pitch = pitch_predictor_forward(
        x, params, kernel_size=kernel_size, max_pitch=max_pitch, beta=beta)
    out_x, pred_pitch = jax.block_until_ready((out_x, pred_pitch))

    ref_x, ref_pred = _reference_forward(
        x, params, kernel_size=kernel_size, max_pitch=max_pitch, beta=beta)
    ref_x, ref_pred = jax.block_until_ready((ref_x, ref_pred))

    assert out_x.shape == (B, T, embed_dim), name
    assert pred_pitch.shape == (B, T), name
    assert bool(jnp.all(jnp.isfinite(out_x))) and bool(jnp.all(jnp.isfinite(pred_pitch))), name
    # pred is continuous -> tight-ish check validates the conv/roll-mask/LN/fold pipeline.
    assert bool(jnp.allclose(pred_pitch, ref_pred, rtol=2e-2, atol=2e-2)), f"{name}: pred mismatch"
    # out_x embeds a discrete bucket lookup; tolerate a rare boundary-tie bucket flip but
    # catch structural errors (missing residual add, wrong table orientation, etc.).
    assert bool(jnp.allclose(out_x, ref_x, atol=2e-1)), f"{name}: out_x mismatch"
    assert float(jnp.mean(jnp.abs(out_x - ref_x))) < 5e-3, f"{name}: out_x mean-abs mismatch"


if __name__ == "__main__":
    # Small demo config (B, T, E) consistent with the module's (batch, time, channels).
    _run_case("tiny", B=2, T=16, embed_dim=32, hidden_dim=32, kernel_size=3,
              pitch_vocab_size=16, max_pitch=800.0, beta=1.0, seed=0)
    # Lane-aligned config (E/H/V multiples of 128) exercises the fused-tap conv path.
    _run_case("aligned", B=2, T=16, embed_dim=128, hidden_dim=128, kernel_size=3,
              pitch_vocab_size=128, max_pitch=800.0, beta=1.0, seed=0)
    print("KERNEL_OK")
</pallas_src>

<mosaic_0001>
module attributes {stable_mosaic.version = 11 : i64} {
  func.func @_pitch_kernel(%arg0: i32, %arg1: memref<2x16x32xf32, #tpu.memory_space<vmem>>, %arg2: memref<96x32xbf16, #tpu.memory_space<vmem>>, %arg3: memref<1x32xf32, #tpu.memory_space<vmem>>, %arg4: memref<1x32xf32, #tpu.memory_space<vmem>>, %arg5: memref<1x32xf32, #tpu.memory_space<vmem>>, %arg6: memref<96x32xbf16, #tpu.memory_space<vmem>>, %arg7: memref<1x32xf32, #tpu.memory_space<vmem>>, %arg8: memref<1x32xf32, #tpu.memory_space<vmem>>, %arg9: memref<16x32xbf16, #tpu.memory_space<vmem>>, %arg10: memref<1x1xf32, #tpu.memory_space<smem>>, %arg11: memref<2x16x32xf32, #tpu.memory_space<vmem>>, %arg12: memref<2x16x1xf32, #tpu.memory_space<vmem>>) attributes {dimension_semantics = [#tpu.dimension_semantics<parallel>], iteration_bounds = array<i64: 1>, scalar_prefetch = 0 : i64, scratch_operands = 0 : i64, tpu.core_type = #tpu.core_type<tc>, window_params = [{transform_indices = @transform_0, window_bounds = array<i64: 2, 16, 32>}, {pipeline_mode = #tpu.pipeline_mode<synchronous>, transform_indices = @transform_1, window_bounds = array<i64: 96, 32>}, {pipeline_mode = #tpu.pipeline_mode<synchronous>, transform_indices = @transform_2, window_bounds = array<i64: 1, 32>}, {pipeline_mode = #tpu.pipeline_mode<synchronous>, transform_indices = @transform_3, window_bounds = array<i64: 1, 32>}, {pipeline_mode = #tpu.pipeline_mode<synchronous>, transform_indices = @transform_4, window_bounds = array<i64: 1, 32>}, {pipeline_mode = #tpu.pipeline_mode<synchronous>, transform_indices = @transform_5, window_bounds = array<i64: 96, 32>}, {pipeline_mode = #tpu.pipeline_mode<synchronous>, transform_indices = @transform_6, window_bounds = array<i64: 1, 32>}, {pipeline_mode = #tpu.pipeline_mode<synchronous>, transform_indices = @transform_7, window_bounds = array<i64: 1, 32>}, {pipeline_mode = #tpu.pipeline_mode<synchronous>, transform_indices = @transform_8, window_bounds = array<i64: 16, 32>}, {transform_indices = @transform_9, window_bounds = array<i64: 1, 1>}, {transform_indices = @transform_10, window_bounds = array<i64: 2, 16, 32>}, {transform_indices = @transform_11, window_bounds = array<i64: 2, 16, 1>}]} {
    %c0 = arith.constant 0 : index
    %c0_0 = arith.constant 0 : index
    %c0_1 = arith.constant 0 : index
    %0 = vector.load %arg1[%c0, %c0_0, %c0_1] : memref<2x16x32xf32, #tpu.memory_space<vmem>>, vector<2x16x32xf32>
    %1 = vector.shape_cast %0 : vector<2x16x32xf32> to vector<32x32xf32>
    %2 = tpu.iota {dimensions = array<i32: 0>} : vector<32x1xi32>
    %c16_i32 = arith.constant 16 : i32
    %c0_i32 = arith.constant 0 : i32
    %3 = arith.cmpi eq, %c16_i32, %c0_i32 : i32
    %c1_i32 = arith.constant 1 : i32
    %4 = arith.select %3, %c1_i32, %c16_i32 : i32
    %5 = vector.broadcast %4 : i32 to vector<32x1xi32>
    %6 = arith.remsi %2, %5 : vector<32x1xi32>
    %c0_i32_2 = arith.constant 0 : i32
    %7 = vector.broadcast %c0_i32_2 : i32 to vector<32x1xi32>
    %8 = arith.cmpi ne, %6, %7 : vector<32x1xi32>
    %c0_i32_3 = arith.constant 0 : i32
    %9 = vector.broadcast %c0_i32_3 : i32 to vector<32x1xi32>
    %10 = arith.cmpi slt, %6, %9 : vector<32x1xi32>
    %c0_i32_4 = arith.constant 0 : i32
    %11 = arith.cmpi slt, %4, %c0_i32_4 : i32
    %12 = vector.broadcast %11 : i1 to vector<32x1xi1>
    %13 = vector.broadcast %12 : vector<32x1xi1> to vector<32x1xi1>
    %14 = arith.xori %10, %13 : vector<32x1xi1>
    %15 = arith.andi %14, %8 : vector<32x1xi1>
    %16 = vector.broadcast %4 : i32 to vector<32x1xi32>
    %17 = arith.addi %6, %16 : vector<32x1xi32>
    %18 = arith.select %15, %17, %6 : vector<32x1xi1>, vector<32x1xi32>
    %c1_i32_5 = arith.constant 1 : i32
    %19 = vector.broadcast %c1_i32_5 : i32 to vector<32x1xi32>
    %20 = arith.cmpi sge, %18, %19 : vector<32x1xi32>
    %c15_i32 = arith.constant 15 : i32
    %21 = vector.broadcast %c15_i32 : i32 to vector<32x1xi32>
    %22 = arith.cmpi slt, %18, %21 : vector<32x1xi32>
    %c1_i32_6 = arith.constant 1 : i32
    %23 = tpu.dynamic_rotate %1 by %c1_i32_6 dim 0 : vector<32x32xf32>, i32 -> vector<32x32xf32>
    %cst = arith.constant 0.000000e+00 : f32
    %24 = vector.shape_cast %20 : vector<32x1xi1> to vector<32x1xi1>
    %25 = vector.broadcast %24 : vector<32x1xi1> to vector<32x32xi1>
    %26 = vector.broadcast %cst : f32 to vector<32x32xf32>
    %27 = arith.select %25, %23, %26 : vector<32x32xi1>, vector<32x32xf32>
    %28 = arith.truncf %27 : vector<32x32xf32> to vector<32x32xbf16>
    %29 = arith.truncf %1 : vector<32x32xf32> to vector<32x32xbf16>
    %c31_i32 = arith.constant 31 : i32
    %30 = tpu.dynamic_rotate %1 by %c31_i32 dim 0 : vector<32x32xf32>, i32 -> vector<32x32xf32>
    %cst_7 = arith.constant 0.000000e+00 : f32
    %31 = vector.shape_cast %22 : vector<32x1xi1> to vector<32x1xi1>
    %32 = vector.broadcast %31 : vector<32x1xi1> to vector<32x32xi1>
    %33 = vector.broadcast %cst_7 : f32 to vector<32x32xf32>
    %34 = arith.select %32, %30, %33 : vector<32x32xi1>, vector<32x32xf32>
    %35 = arith.truncf %34 : vector<32x32xf32> to vector<32x32xbf16>
    %c0_8 = arith.constant 0 : index
    %c0_9 = arith.constant 0 : index
    %36 = vector.load %arg2[%c0_8, %c0_9] : memref<96x32xbf16, #tpu.memory_space<vmem>>, vector<32x32xbf16>
    %cst_10 = arith.constant dense<0.000000e+00> : vector<32x32xf32>
    %37 = tpu.matmul %28, %36, %cst_10 {dimension_numbers = #tpu.dot_dimension_numbers<[1], [0], [0], [1], [0, 0, 1, 1], [], []>} : vector<32x32xbf16>, vector<32x32xbf16>, vector<32x32xf32> -> vector<32x32xf32>
    %c32 = arith.constant 32 : index
    %c0_11 = arith.constant 0 : index
    %38 = vector.load %arg2[%c32, %c0_11] : memref<96x32xbf16, #tpu.memory_space<vmem>>, vector<32x32xbf16>
    %cst_12 = arith.constant dense<0.000000e+00> : vector<32x32xf32>
    %39 = tpu.matmul %29, %38, %cst_12 {dimension_numbers = #tpu.dot_dimension_numbers<[1], [0], [0], [1], [0, 0, 1, 1], [], []>} : vector<32x32xbf16>, vector<32x32xbf16>, vector<32x32xf32> -> vector<32x32xf32>
    %40 = arith.addf %37, %39 : vector<32x32xf32>
    %c64 = arith.constant 64 : index
    %c0_13 = arith.constant 0 : index
    %41 = vector.load %arg2[%c64, %c0_13] : memref<96x32xbf16, #tpu.memory_space<vmem>>, vector<32x32xbf16>
    %cst_14 = arith.constant dense<0.000000e+00> : vector<32x32xf32>
    %42 = tpu.matmul %35, %41, %cst_14 {dimension_numbers = #tpu.dot_dimension_numbers<[1], [0], [0], [1], [0, 0, 1, 1], [], []>} : vector<32x32xbf16>, vector<32x32xbf16>, vector<32x32xf32> -> vector<32x32xf32>
    %43 = arith.addf %40, %42 : vector<32x32xf32>
    %c0_15 = arith.constant 0 : index
    %c0_16 = arith.constant 0 : index
    %44 = vector.load %arg3[%c0_15, %c0_16] : memref<1x32xf32, #tpu.memory_space<vmem>>, vector<1x32xf32>
    %45 = vector.broadcast %44 : vector<1x32xf32> to vector<32x32xf32>
    %46 = arith.addf %43, %45 : vector<32x32xf32>
    %cst_17 = arith.constant 0.000000e+00 : f32
    %47 = vector.broadcast %cst_17 : f32 to vector<32x32xf32>
    %48 = arith.maximumf %46, %47 : vector<32x32xf32>
    %cst_18 = arith.constant dense<0.000000e+00> : vector<32xf32>
    %49 = vector.multi_reduction <add>, %48, %cst_18 [1] : vector<32x32xf32> to vector<32xf32>
    %50 = vector.shape_cast %49 : vector<32xf32> to vector<32x1xf32>
    %cst_19 = arith.constant 3.125000e-02 : f32
    %51 = vector.broadcast %cst_19 : f32 to vector<32x1xf32>
    %52 = arith.mulf %50, %51 : vector<32x1xf32>
    %53 = arith.mulf %48, %48 : vector<32x32xf32>
    %cst_20 = arith.constant dense<0.000000e+00> : vector<32xf32>
    %54 = vector.multi_reduction <add>, %53, %cst_20 [1] : vector<32x32xf32> to vector<32xf32>
    %55 = vector.shape_cast %54 : vector<32xf32> to vector<32x1xf32>
    %cst_21 = arith.constant 3.125000e-02 : f32
    %56 = vector.broadcast %cst_21 : f32 to vector<32x1xf32>
    %57 = arith.mulf %55, %56 : vector<32x1xf32>
    %58 = arith.mulf %52, %52 : vector<32x1xf32>
    %59 = arith.subf %57, %58 : vector<32x1xf32>
    %60 = vector.broadcast %52 : vector<32x1xf32> to vector<32x32xf32>
    %61 = arith.subf %48, %60 : vector<32x32xf32>
    %cst_22 = arith.constant 9.99999974E-6 : f32
    %62 = vector.broadcast %cst_22 : f32 to vector<32x1xf32>
    %63 = arith.addf %59, %62 : vector<32x1xf32>
    %64 = math.rsqrt %63 : vector<32x1xf32>
    %65 = vector.broadcast %64 : vector<32x1xf32> to vector<32x32xf32>
    %66 = arith.mulf %61, %65 : vector<32x32xf32>
    %c0_23 = arith.constant 0 : index
    %c0_24 = arith.constant 0 : index
    %67 = vector.load %arg4[%c0_23, %c0_24] : memref<1x32xf32, #tpu.memory_space<vmem>>, vector<1x32xf32>
    %68 = vector.broadcast %67 : vector<1x32xf32> to vector<32x32xf32>
    %69 = arith.mulf %66, %68 : vector<32x32xf32>
    %c0_25 = arith.constant 0 : index
    %c0_26 = arith.constant 0 : index
    %70 = vector.load %arg5[%c0_25, %c0_26] : memref<1x32xf32, #tpu.memory_space<vmem>>, vector<1x32xf32>
    %71 = vector.broadcast %70 : vector<1x32xf32> to vector<32x32xf32>
    %72 = arith.addf %69, %71 : vector<32x32xf32>
    %c1_i32_27 = arith.constant 1 : i32
    %73 = tpu.dynamic_rotate %72 by %c1_i32_27 dim 0 : vector<32x32xf32>, i32 -> vector<32x32xf32>
    %cst_28 = arith.constant 0.000000e+00 : f32
    %74 = vector.shape_cast %20 : vector<32x1xi1> to vector<32x1xi1>
    %75 = vector.broadcast %74 : vector<32x1xi1> to vector<32x32xi1>
    %76 = vector.broadcast %cst_28 : f32 to vector<32x32xf32>
    %77 = arith.select %75, %73, %76 : vector<32x32xi1>, vector<32x32xf32>
    %78 = arith.truncf %77 : vector<32x32xf32> to vector<32x32xbf16>
    %79 = arith.truncf %72 : vector<32x32xf32> to vector<32x32xbf16>
    %c31_i32_29 = arith.constant 31 : i32
    %80 = tpu.dynamic_rotate %72 by %c31_i32_29 dim 0 : vector<32x32xf32>, i32 -> vector<32x32xf32>
    %cst_30 = arith.constant 0.000000e+00 : f32
    %81 = vector.shape_cast %22 : vector<32x1xi1> to vector<32x1xi1>
    %82 = vector.broadcast %81 : vector<32x1xi1> to vector<32x32xi1>
    %83 = vector.broadcast %cst_30 : f32 to vector<32x32xf32>
    %84 = arith.select %82, %80, %83 : vector<32x32xi1>, vector<32x32xf32>
    %85 = arith.truncf %84 : vector<32x32xf32> to vector<32x32xbf16>
    %c0_31 = arith.constant 0 : index
    %c0_32 = arith.constant 0 : index
    %86 = vector.load %arg6[%c0_31, %c0_32] : memref<96x32xbf16, #tpu.memory_space<vmem>>, vector<32x32xbf16>
    %cst_33 = arith.constant dense<0.000000e+00> : vector<32x32xf32>
    %87 = tpu.matmul %78, %86, %cst_33 {dimension_numbers = #tpu.dot_dimension_numbers<[1], [0], [0], [1], [0, 0, 1, 1], [], []>} : vector<32x32xbf16>, vector<32x32xbf16>, vector<32x32xf32> -> vector<32x32xf32>
    %c32_34 = arith.constant 32 : index
    %c0_35 = arith.constant 0 : index
    %88 = vector.load %arg6[%c32_34, %c0_35] : memref<96x32xbf16, #tpu.memory_space<vmem>>, vector<32x32xbf16>
    %cst_36 = arith.constant dense<0.000000e+00> : vector<32x32xf32>
    %89 = tpu.matmul %79, %88, %cst_36 {dimension_numbers = #tpu.dot_dimension_numbers<[1], [0], [0], [1], [0, 0, 1, 1], [], []>} : vector<32x32xbf16>, vector<32x32xbf16>, vector<32x32xf32> -> vector<32x32xf32>
    %90 = arith.addf %87, %89 : vector<32x32xf32>
    %c64_37 = arith.constant 64 : index
    %c0_38 = arith.constant 0 : index
    %91 = vector.load %arg6[%c64_37, %c0_38] : memref<96x32xbf16, #tpu.memory_space<vmem>>, vector<32x32xbf16>
    %cst_39 = arith.constant dense<0.000000e+00> : vector<32x32xf32>
    %92 = tpu.matmul %85, %91, %cst_39 {dimension_numbers = #tpu.dot_dimension_numbers<[1], [0], [0], [1], [0, 0, 1, 1], [], []>} : vector<32x32xbf16>, vector<32x32xbf16>, vector<32x32xf32> -> vector<32x32xf32>
    %93 = arith.addf %90, %92 : vector<32x32xf32>
    %c0_40 = arith.constant 0 : index
    %c0_41 = arith.constant 0 : index
    %94 = vector.load %arg7[%c0_40, %c0_41] : memref<1x32xf32, #tpu.memory_space<vmem>>, vector<1x32xf32>
    %95 = vector.broadcast %94 : vector<1x32xf32> to vector<32x32xf32>
    %96 = arith.addf %93, %95 : vector<32x32xf32>
    %cst_42 = arith.constant 0.000000e+00 : f32
    %97 = vector.broadcast %cst_42 : f32 to vector<32x32xf32>
    %98 = arith.maximumf %96, %97 : vector<32x32xf32>
    %cst_43 = arith.constant dense<0.000000e+00> : vector<32xf32>
    %99 = vector.multi_reduction <add>, %98, %cst_43 [1] : vector<32x32xf32> to vector<32xf32>
    %100 = vector.shape_cast %99 : vector<32xf32> to vector<32x1xf32>
    %cst_44 = arith.constant 3.125000e-02 : f32
    %101 = vector.broadcast %cst_44 : f32 to vector<32x1xf32>
    %102 = arith.mulf %100, %101 : vector<32x1xf32>
    %103 = arith.mulf %98, %98 : vector<32x32xf32>
    %cst_45 = arith.constant dense<0.000000e+00> : vector<32xf32>
    %104 = vector.multi_reduction <add>, %103, %cst_45 [1] : vector<32x32xf32> to vector<32xf32>
    %105 = vector.shape_cast %104 : vector<32xf32> to vector<32x1xf32>
    %cst_46 = arith.constant 3.125000e-02 : f32
    %106 = vector.broadcast %cst_46 : f32 to vector<32x1xf32>
    %107 = arith.mulf %105, %106 : vector<32x1xf32>
    %108 = arith.mulf %102, %102 : vector<32x1xf32>
    %109 = arith.subf %107, %108 : vector<32x1xf32>
    %c0_47 = arith.constant 0 : index
    %c0_48 = arith.constant 0 : index
    %110 = vector.load %arg8[%c0_47, %c0_48] : memref<1x32xf32, #tpu.memory_space<vmem>>, vector<1x32xf32>
    %cst_49 = arith.constant dense<0.000000e+00> : vector<1xf32>
    %111 = vector.multi_reduction <add>, %110, %cst_49 [1] : vector<1x32xf32> to vector<1xf32>
    %112 = vector.shape_cast %111 : vector<1xf32> to vector<1x1xf32>
    %113 = vector.broadcast %110 : vector<1x32xf32> to vector<32x32xf32>
    %114 = arith.mulf %98, %113 : vector<32x32xf32>
    %cst_50 = arith.constant dense<0.000000e+00> : vector<32xf32>
    %115 = vector.multi_reduction <add>, %114, %cst_50 [1] : vector<32x32xf32> to vector<32xf32>
    %116 = vector.shape_cast %115 : vector<32xf32> to vector<32x1xf32>
    %cst_51 = arith.constant 9.99999974E-6 : f32
    %117 = vector.broadcast %cst_51 : f32 to vector<32x1xf32>
    %118 = arith.addf %109, %117 : vector<32x1xf32>
    %119 = math.rsqrt %118 : vector<32x1xf32>
    %120 = vector.broadcast %112 : vector<1x1xf32> to vector<32x1xf32>
    %121 = arith.mulf %102, %120 : vector<32x1xf32>
    %122 = arith.subf %116, %121 : vector<32x1xf32>
    %123 = arith.mulf %119, %122 : vector<32x1xf32>
    %c0_52 = arith.constant 0 : index
    %c0_53 = arith.constant 0 : index
    %124 = memref.load %arg10[%c0_52, %c0_53] : memref<1x1xf32, #tpu.memory_space<smem>>
    %125 = vector.broadcast %124 : f32 to vector<32x1xf32>
    %126 = arith.addf %123, %125 : vector<32x1xf32>
    %cst_54 = arith.constant 6.68586111 : f32
    %127 = vector.broadcast %cst_54 : f32 to vector<32x1xf32>
    %128 = arith.mulf %126, %127 : vector<32x1xf32>
    %cst_55 = arith.constant 8.000000e+01 : f32
    %129 = vector.broadcast %cst_55 : f32 to vector<32x1xf32>
    %130 = arith.minimumf %128, %129 : vector<32x1xf32>
    %131 = math.exp %130 : vector<32x1xf32>
    %cst_56 = arith.constant 1.000000e+00 : f32
    %132 = vector.broadcast %cst_56 : f32 to vector<32x1xf32>
    %133 = arith.subf %131, %132 : vector<32x1xf32>
    %cst_57 = arith.constant 1.000000e+00 : f32
    %134 = vector.broadcast %cst_57 : f32 to vector<32x1xf32>
    %135 = arith.mulf %133, %134 : vector<32x1xf32>
    %136 = math.log1p %135 : vector<32x1xf32>
    %cst_58 = arith.constant 6.68586111 : f32
    %137 = vector.broadcast %cst_58 : f32 to vector<32x1xf32>
    %138 = arith.divf %136, %137 : vector<32x1xf32>
    %cst_59 = arith.constant 0.000000e+00 : f32
    %cst_60 = arith.constant 1.000000e+00 : f32
    %139 = vector.broadcast %cst_59 : f32 to vector<32x1xf32>
    %140 = arith.maximumf %139, %138 : vector<32x1xf32>
    %141 = vector.broadcast %cst_60 : f32 to vector<32x1xf32>
    %142 = arith.minimumf %141, %140 : vector<32x1xf32>
    %cst_61 = arith.constant 1.500000e+01 : f32
    %143 = vector.broadcast %cst_61 : f32 to vector<32x1xf32>
    %144 = arith.mulf %142, %143 : vector<32x1xf32>
    %145 = math.ceil %144 : vector<32x1xf32>
    %c0_i32_62 = arith.constant 0 : i32
    %c15_i32_63 = arith.constant 15 : i32
    %146 = arith.sitofp %c0_i32_62 : i32 to f32
    %147 = vector.broadcast %146 : f32 to vector<32x1xf32>
    %148 = arith.maximumf %147, %145 : vector<32x1xf32>
    %149 = arith.sitofp %c15_i32_63 : i32 to f32
    %150 = vector.broadcast %149 : f32 to vector<32x1xf32>
    %151 = arith.minimumf %150, %148 : vector<32x1xf32>
    %152 = arith.fptosi %151 : vector<32x1xf32> to vector<32x1xi32>
    %153 = tpu.iota {dimensions = array<i32: 1>} : vector<32x16xi32>
    %c0_i32_64 = arith.constant 0 : i32
    %154 = vector.broadcast %c0_i32_64 : i32 to vector<32x16xi32>
    %155 = arith.addi %153, %154 : vector<32x16xi32>
    %156 = vector.broadcast %152 : vector<32x1xi32> to vector<32x16xi32>
    %157 = arith.cmpi eq, %155, %156 : vector<32x16xi32>
    %158 = arith.extui %157 : vector<32x16xi1> to vector<32x16xi32>
    %159 = arith.sitofp %158 : vector<32x16xi32> to vector<32x16xf32>
    %160 = arith.truncf %159 : vector<32x16xf32> to vector<32x16xbf16>
    %c0_65 = arith.constant 0 : index
    %c0_66 = arith.constant 0 : index
    %161 = vector.load %arg9[%c0_65, %c0_66] : memref<16x32xbf16, #tpu.memory_space<vmem>>, vector<16x32xbf16>
    %cst_67 = arith.constant dense<0.000000e+00> : vector<32x32xf32>
    %162 = tpu.matmul %160, %161, %cst_67 {dimension_numbers = #tpu.dot_dimension_numbers<[1], [0], [0], [1], [0, 0, 1, 1], [], []>} : vector<32x16xbf16>, vector<16x32xbf16>, vector<32x32xf32> -> vector<32x32xf32>
    %163 = arith.addf %1, %162 : vector<32x32xf32>
    %164 = vector.shape_cast %163 : vector<32x32xf32> to vector<2x16x32xf32>
    %c0_68 = arith.constant 0 : index
    %c0_69 = arith.constant 0 : index
    %c0_70 = arith.constant 0 : index
    %165 = vector.load %arg11[%c0_68, %c0_69, %c0_70] : memref<2x16x32xf32, #tpu.memory_space<vmem>>, vector<2x16x32xf32>
    tpu.vector_store %arg11[%c0_68, %c0_69, %c0_70], %164 {strides = array<i32>} : memref<2x16x32xf32, #tpu.memory_space<vmem>>, vector<2x16x32xf32>,
    %166 = vector.shape_cast %126 : vector<32x1xf32> to vector<2x16x1xf32>
    %c0_71 = arith.constant 0 : index
    %c0_72 = arith.constant 0 : index
    %c0_73 = arith.constant 0 : index
    %167 = vector.load %arg12[%c0_71, %c0_72, %c0_73] : memref<2x16x1xf32, #tpu.memory_space<vmem>>, vector<2x16x1xf32>
    tpu.vector_store %arg12[%c0_71, %c0_72, %c0_73], %166 {strides = array<i32>} : memref<2x16x1xf32, #tpu.memory_space<vmem>>, vector<2x16x1xf32>,
    return
  }
  func.func @transform_0(%arg0: i32) -> (i32, i32, i32) {
    %c0_i32 = arith.constant 0 : i32
    %c0_i32_0 = arith.constant 0 : i32
    %c0_i32_1 = arith.constant 0 : i32
    return %arg0, %c0_i32, %c0_i32_0 : i32, i32, i32
  }
  func.func @transform_1(%arg0: i32) -> (i32, i32) {
    %c0_i32 = arith.constant 0 : i32
    %c0_i32_0 = arith.constant 0 : i32
    %c0_i32_1 = arith.constant 0 : i32
    return %c0_i32, %c0_i32_0 : i32, i32
  }
  func.func @transform_2(%arg0: i32) -> (i32, i32) {
    %c0_i32 = arith.constant 0 : i32
    %c0_i32_0 = arith.constant 0 : i32
    %c0_i32_1 = arith.constant 0 : i32
    return %c0_i32, %c0_i32_0 : i32, i32
  }
  func.func @transform_3(%arg0: i32) -> (i32, i32) {
    %c0_i32 = arith.constant 0 : i32
    %c0_i32_0 = arith.constant 0 : i32
    %c0_i32_1 = arith.constant 0 : i32
    return %c0_i32, %c0_i32_0 : i32, i32
  }
  func.func @transform_4(%arg0: i32) -> (i32, i32) {
    %c0_i32 = arith.constant 0 : i32
    %c0_i32_0 = arith.constant 0 : i32
    %c0_i32_1 = arith.constant 0 : i32
    return %c0_i32, %c0_i32_0 : i32, i32
  }
  func.func @transform_5(%arg0: i32) -> (i32, i32) {
    %c0_i32 = arith.constant 0 : i32
    %c0_i32_0 = arith.constant 0 : i32
    %c0_i32_1 = arith.constant 0 : i32
    return %c0_i32, %c0_i32_0 : i32, i32
  }
  func.func @transform_6(%arg0: i32) -> (i32, i32) {
    %c0_i32 = arith.constant 0 : i32
    %c0_i32_0 = arith.constant 0 : i32
    %c0_i32_1 = arith.constant 0 : i32
    return %c0_i32, %c0_i32_0 : i32, i32
  }
  func.func @transform_7(%arg0: i32) -> (i32, i32) {
    %c0_i32 = arith.constant 0 : i32
    %c0_i32_0 = arith.constant 0 : i32
    %c0_i32_1 = arith.constant 0 : i32
    return %c0_i32, %c0_i32_0 : i32, i32
  }
  func.func @transform_8(%arg0: i32) -> (i32, i32) {
    %c0_i32 = arith.constant 0 : i32
    %c0_i32_0 = arith.constant 0 : i32
    %c0_i32_1 = arith.constant 0 : i32
    return %c0_i32, %c0_i32_0 : i32, i32
  }
  func.func @transform_9(%arg0: i32) -> (i32, i32) {
    %c0_i32 = arith.constant 0 : i32
    %c0_i32_0 = arith.constant 0 : i32
    %c0_i32_1 = arith.constant 0 : i32
    return %c0_i32, %c0_i32_0 : i32, i32
  }
  func.func @transform_10(%arg0: i32) -> (i32, i32, i32) {
    %c0_i32 = arith.constant 0 : i32
    %c0_i32_0 = arith.constant 0 : i32
    %c0_i32_1 = arith.constant 0 : i32
    return %arg0, %c0_i32, %c0_i32_0 : i32, i32, i32
  }
  func.func @transform_11(%arg0: i32) -> (i32, i32, i32) {
    %c0_i32 = arith.constant 0 : i32
    %c0_i32_0 = arith.constant 0 : i32
    %c0_i32_1 = arith.constant 0 : i32
    return %arg0, %c0_i32, %c0_i32_0 : i32, i32, i32
  }
}

</mosaic_0001>

<llo_original>
// kernel: tpu_custom_call.1
$region0: #{tpu_custom_call.1}
  #allocation0 [shape = 'u32[]', space=smem, size = 0x4, offset = 0x4, fixed_abs, tag = 'smem constant byte address 0x4 - core index']
  #allocation1 [shape = 'u32[72,128]{1,0:T(1,128)}', space=vmem, size = 0x9000, scoped, tag = 'internal scratch']
  #allocation2 [shape = 'f32[1,1]{1,0:T(1,128)S(6)}', space=smem, size = 0x200, scoped, tag = 'scoped memory for tpu_custom_call.1']
  %s0 = inlined_call_operand.vmem [shape: f32[2,16,32], index: 0, kind: input, shape index: {}]
  %s1 = inlined_call_operand.vmem [shape: bf16[96,32], index: 1, kind: input, shape index: {}]
  %s2 = inlined_call_operand.vmem [shape: f32[1,32], index: 2, kind: input, shape index: {}]
  %s3 = inlined_call_operand.vmem [shape: f32[1,32], index: 3, kind: input, shape index: {}]
  %s4 = inlined_call_operand.vmem [shape: f32[1,32], index: 4, kind: input, shape index: {}]
  %s5 = inlined_call_operand.vmem [shape: bf16[96,32], index: 5, kind: input, shape index: {}]
  %s6 = inlined_call_operand.vmem [shape: f32[1,32], index: 6, kind: input, shape index: {}]
  %s7 = inlined_call_operand.vmem [shape: f32[1,32], index: 7, kind: input, shape index: {}]
  %s8 = inlined_call_operand.vmem [shape: bf16[16,32], index: 8, kind: input, shape index: {}]
  %s9 = inlined_call_operand.<no memory space> [shape: f32[1,1], index: 9, kind: input, shape index: {}]
  %s10 = inlined_call_operand.hbm [shape: f32[2,16,32], index: 10, kind: output, shape index: {0}]
  %s11 = inlined_call_operand.vmem [shape: f32[2,16,1], index: 11, kind: output, shape index: {1}]
  %12 = xla_tuple %s10, %s11
  %s13 = sld [smem:[#allocation0]]
  $region58: #{tpu_custom_call.1} parent=0
    _
  %s15 = ssub.s32 1, %s13
  %s16 = scalar_select 0, %s15, %s13
  %17 = sst [smem:[#allocation2]] %s9
  $region1: #{tpu_custom_call.1} parent=0
    #allocation3 [shape = 'u8[16384]{0}', space=vmem, size = 0x4000, scoped, tag = 'output window, operand 0, single buffered']
    #allocation4 [shape = 's32[1]{0}', space=sflag, size = 0x4, scoped, tag = 'scoped memory for tpu_custom_call.1']
    %18 = vsyncpa [#allocation4], 0
    // Predicated region
    $region2: #{tpu_custom_call.1} parent=1 // pred_check
      _
    $region3: #{tpu_custom_call.1} parent=1 // pred_check_branch
      %20 = sbr.rel (0) target = $region5
    $region4: #{tpu_custom_call.1} parent=1 // pred_region
      _
    $region5: #{tpu_custom_call.1} parent=1 // pred_fallthru
      _
    // Predicated region
    $region6: #{tpu_custom_call.1} parent=1 // pred_check
      _
    $region7: #{tpu_custom_call.1} parent=1 // pred_check_branch
      %22 = sbr.rel (0) target = $region9
    $region8: #{tpu_custom_call.1} parent=1 // pred_region
      _
    $region9: #{tpu_custom_call.1} parent=1 // pred_fallthru
      _
    // Predicated region
    $region10: #{tpu_custom_call.1} parent=1 // pred_check
      _
    $region11: #{tpu_custom_call.1} parent=1 // pred_check_branch
      %24 = sbr.rel (0) target = $region13
    $region12: #{tpu_custom_call.1} parent=1 // pred_region
      _
    $region13: #{tpu_custom_call.1} parent=1 // pred_fallthru
      _
    // Predicated region
    $region14: #{tpu_custom_call.1} parent=1 // pred_check
      _
    $region15: #{tpu_custom_call.1} parent=1 // pred_check_branch
      %26 = sbr.rel (0) target = $region17
    $region16: #{tpu_custom_call.1} parent=1 // pred_region
      _
    $region17: #{tpu_custom_call.1} parent=1 // pred_fallthru
      _
    // Predicated region
    $region18: #{tpu_custom_call.1} parent=1 // pred_check
      _
    $region19: #{tpu_custom_call.1} parent=1 // pred_check_branch
      %28 = sbr.rel (0) target = $region21
    $region20: #{tpu_custom_call.1} parent=1 // pred_region
      _
    $region21: #{tpu_custom_call.1} parent=1 // pred_fallthru
      _
    // Predicated region
    $region22: #{tpu_custom_call.1} parent=1 // pred_check
      _
    $region23: #{tpu_custom_call.1} parent=1 // pred_check_branch
      %30 = sbr.rel (0) target = $region25
    $region24: #{tpu_custom_call.1} parent=1 // pred_region
      _
    $region25: #{tpu_custom_call.1} parent=1 // pred_fallthru
      _
    // Predicated region
    $region26: #{tpu_custom_call.1} parent=1 // pred_check
      _
    $region27: #{tpu_custom_call.1} parent=1 // pred_check_branch
      %32 = sbr.rel (0) target = $region29
    $region28: #{tpu_custom_call.1} parent=1 // pred_region
      _
    $region29: #{tpu_custom_call.1} parent=1 // pred_fallthru
      _
    // Predicated region
    $region30: #{tpu_custom_call.1} parent=1 // pred_check
      _
    $region31: #{tpu_custom_call.1} parent=1 // pred_check_branch
      %34 = sbr.rel (0) target = $region33
    $region32: #{tpu_custom_call.1} parent=1 // pred_region
      _
    $region33: #{tpu_custom_call.1} parent=1 // pred_fallthru
      _
    // Predicated region
    $region34: #{tpu_custom_call.1} parent=1 // pred_check
      _
    $region35: #{tpu_custom_call.1} parent=1 // pred_check_branch
      %36 = sbr.rel (0) target = $region37
    $region36: #{tpu_custom_call.1} parent=1 // pred_region
      _
    $region37: #{tpu_custom_call.1} parent=1 // pred_fallthru
      _
    // Predicated region
    $region38: #{tpu_custom_call.1} parent=1 // pred_check
      _
    $region39: #{tpu_custom_call.1} parent=1 // pred_check_branch
      %38 = sbr.rel (0) target = $region41
    $region40: #{tpu_custom_call.1} parent=1 // pred_region
      _
    $region41: #{tpu_custom_call.1} parent=1 // pred_fallthru
      _
    %v40 = vld [vmem:[%s0] sm:$0xff]
    %v41 = vld [vmem:[%s0 + $0x8] sm:$0xff]
    %v42 = vld [vmem:[%s0 + $0x10] sm:$0xff]
    %v43 = vld [vmem:[%s0 + $0x18] sm:$0xff]
    %v44 = vlaneseq
    %v45 = vshrl.u32 %v44, 7
    %v46 = vadd.s32 %v45, 8
    %v47 = vadd.s32 %v45, 16
    %v48 = vadd.s32 %v45, 24
    %vm49 = vcmp.lt.s32.totalorder %v45, 0
    %v50 = vsub.s32 0, %v45
    %v51 = vsel %vm49, %v50, %v45
    %v52 = vshrl.u32 %v51, 4
    %v53 = vand.u32 %v51, 15
    %v54 = vsub.s32 0, %v53
    %v55 = vsel %vm49, %v54, %v53
    %vm56 = vcmp.lt.s32.totalorder %v46, 0
    %v57 = vsub.s32 0, %v46
    %v58 = vsel %vm56, %v57, %v46
    %v59 = vshrl.u32 %v58, 4
    %v60 = vand.u32 %v58, 15
    %v61 = vsub.s32 0, %v60
    %v62 = vsel %vm56, %v61, %v60
    %vm63 = vcmp.lt.s32.totalorder %v47, 0
    %v64 = vsub.s32 0, %v47
    %v65 = vsel %vm63, %v64, %v47
    %v66 = vshrl.u32 %v65, 4
    %v67 = vand.u32 %v65, 15
    %v68 = vsub.s32 0, %v67
    %v69 = vsel %vm63, %v68, %v67
    %vm70 = vcmp.lt.s32.totalorder %v48, 0
    %v71 = vsub.s32 0, %v48
    %v72 = vsel %vm70, %v71, %v48
    %v73 = vshrl.u32 %v72, 4
    %v74 = vand.u32 %v72, 15
    %v75 = vsub.s32 0, %v74
    %v76 = vsel %vm70, %v75, %v74
    %vm77 = vcmp.ne.s32.totalorder %v55, 0
    %vm78 = vcmp.ne.s32.totalorder %v62, 0
    %vm79 = vcmp.ne.s32.totalorder %v69, 0
    %vm80 = vcmp.ne.s32.totalorder %v76, 0
    %vm81 = vcmp.lt.s32.totalorder %v55, 0
    %vm82 = vcmp.lt.s32.totalorder %v62, 0
    %vm83 = vcmp.lt.s32.totalorder %v69, 0
    %vm84 = vcmp.lt.s32.totalorder %v76, 0
    %vm85 = vmand %vm81, %vm77
    %vm86 = vmand %vm82, %vm78
    %vm87 = vmand %vm83, %vm79
    %vm88 = vmand %vm84, %vm80
    %v89 = vadd.s32 %v55, 16
    %v90 = vadd.s32 %v62, 16
    %v91 = vadd.s32 %v69, 16
    %v92 = vadd.s32 %v76, 16
    %v93 = vsel %vm85, %v89, %v55
    %v94 = vsel %vm86, %v90, %v62
    %v95 = vsel %vm87, %v91, %v69
    %v96 = vsel %vm88, %v92, %v76
    %vm97 = vcmp.ge.s32.totalorder %v93, 1
    %vm98 = vcmp.ge.s32.totalorder %v94, 1
    %vm99 = vcmp.ge.s32.totalorder %v95, 1
    %vm100 = vcmp.ge.s32.totalorder %v96, 1
    %vm101 = vcmp.lt.s32.totalorder %v93, 15
    %vm102 = vcmp.lt.s32.totalorder %v94, 15
    %vm103 = vcmp.lt.s32.totalorder %v95, 15
    %vm104 = vcmp.lt.s32.totalorder %v96, 15
    %v105 = vrot.slane %v40, 7
    %v106 = vrot.slane %v41, 7
    %v107 = vrot.slane %v42, 7
    %v108 = vrot.slane %v43, 7
    %vm109 = vcmp.lt.s32.totalorder %v45, 1
    %v110 = vsel %vm109, %v107, %v108
    %v111 = vsel %vm109, %v106, %v107
    %v112 = vsel %vm109, %v105, %v106
    %v113 = vsel %vm109, %v108, %v105
    %v114 = vsel %vm97, 1, 0
    %v115 = vsel %vm98, 1, 0
    %v116 = vsel %vm99, 1, 0
    %v117 = vsel %vm100, 1, 0
    %vm118 = vcmp.eq.s32.totalorder %v114, 1
    %vm119 = vcmp.eq.s32.totalorder %v115, 1
    %vm120 = vcmp.eq.s32.totalorder %v116, 1
    %vm121 = vcmp.eq.s32.totalorder %v117, 1
    %v122 = vsel %vm118, %v113, 0.0
    %v123 = vsel %vm119, %v112, 0.0
    %v124 = vsel %vm120, %v111, 0.0
    %v125 = vsel %vm121, %v110, 0.0
    %v126 = vpack.c.bf16 %v123, %v122
    %v127 = vpack.c.bf16 %v125, %v124
    %v128 = vpack.c.bf16 %v41, %v40
    %v129 = vpack.c.bf16 %v43, %v42
    %v130 = vrot.slane %v40, 1
    %v131 = vrot.slane %v41, 1
    %v132 = vrot.slane %v42, 1
    %v133 = vrot.slane %v43, 1
    %vm134 = vcmp.lt.s32.totalorder %v45, 7
    %v135 = vsel %vm134, %v132, %v133
    %v136 = vsel %vm134, %v131, %v132
    %v137 = vsel %vm134, %v130, %v131
    %v138 = vsel %vm134, %v133, %v130
    %v139 = vsel %vm101, 1, 0
    %v140 = vsel %vm102, 1, 0
    %v141 = vsel %vm103, 1, 0
    %v142 = vsel %vm104, 1, 0
    %vm143 = vcmp.eq.s32.totalorder %v139, 1
    %vm144 = vcmp.eq.s32.totalorder %v140, 1
    %vm145 = vcmp.eq.s32.totalorder %v141, 1
    %vm146 = vcmp.eq.s32.totalorder %v142, 1
    %v147 = vsel %vm143, %v137, 0.0
    %v148 = vsel %vm144, %v136, 0.0
    %v149 = vsel %vm145, %v135, 0.0
    %v150 = vsel %vm146, %v138, 0.0
    %v151 = vpack.c.bf16 %v148, %v147
    %v152 = vpack.c.bf16 %v150, %v149
    %v153 = vld [vmem:[%s1] sm:$0xf]
    %v154 = vld [vmem:[%s1 + $0x4] sm:$0xf]
    %v155 = vld [vmem:[%s1 + $0x8] sm:$0xf]
    %v156 = vld [vmem:[%s1 + $0xc] sm:$0xf]
    %v157 = vld [vmem:[%s1 + $0x10] sm:$0xf]
    %v158 = vld [vmem:[%s1 + $0x14] sm:$0xf]
    %v159 = vld [vmem:[%s1 + $0x18] sm:$0xf]
    %v160 = vld [vmem:[%s1 + $0x1c] sm:$0xf]
    %v165 = vunpack.c.l.b16 %v157
    %v166 = vunpack.c.l.b16 %v158
    %v167 = vunpack.c.l.b16 %v159
    %v168 = vunpack.c.l.b16 %v160
    %v169 = vpack.c.b16 %v166, %v165
    %v170 = vpack.c.b16 %v168, %v167
    %vm173 = vcmask 261120
    %v175 = vsel %vm173, %v128, 0
    %v178 = vsel %vm173, %v129, 0
    %180 = vmatpush.bf16.msra.mxu0 0
    %181 = vmatpush.bf16.msra.mxu0 0
    %182 = vmatpush.bf16.msra.mxu0 0
    %183 = vmatpush.bf16.msra.mxu0 0
    %184 = vmatpush.bf16.msra.mxu0 0
    %185 = vmatpush.bf16.msra.mxu0 0
    %186 = vmatpush.bf16.msra.mxu0 %v170
    %187 = vmatpush.bf16.msra.mxu0 %v169
    %188 = vmatmul.bf16.gmra.mxu0 %v175
    %v189 = vpop.f32.mrf.mxu0
    %v190 = vadd.f32 0.0, %v189
    %v191 = vpop.f32.mrf.mxu0
    %v192 = vadd.f32 0.0, %v191
    %193 = vmatmul.bf16.gmra.mxu0 %v178
    %v194 = vpop.f32.mrf.mxu0
    %v195 = vadd.f32 0.0, %v194
    %v196 = vpop.f32.mrf.mxu0
    %v197 = vadd.f32 0.0, %v196
    %198 = vdwg.mxu0
    %v203 = vunpack.c.l.b16 %v153
    %v204 = vunpack.c.l.b16 %v154
    %v205 = vunpack.c.l.b16 %v155
    %v206 = vunpack.c.l.b16 %v156
    %v207 = vpack.c.b16 %v204, %v203
    %v208 = vpack.c.b16 %v206, %v205
    %v212 = vsel %vm173, %v126, 0
    %v215 = vsel %vm173, %v127, 0
    %217 = vmatpush.bf16.msra.mxu0 0
    %218 = vmatpush.bf16.msra.mxu0 0
    %219 = vmatpush.bf16.msra.mxu0 0
    %220 = vmatpush.bf16.msra.mxu0 0
    %221 = vmatpush.bf16.msra.mxu0 0
    %222 = vmatpush.bf16.msra.mxu0 0
    %223 = vmatpush.bf16.msra.mxu0 %v208
    %224 = vmatpush.bf16.msra.mxu0 %v207
    %225 = vmatmul.bf16.gmra.mxu0 %v212
    %v226 = vpop.f32.mrf.mxu0
    %v227 = vadd.f32 %v190, %v226
    %v228 = vpop.f32.mrf.mxu0
    %v229 = vadd.f32 %v192, %v228
    %230 = vmatmul.bf16.gmra.mxu0 %v215
    %v231 = vpop.f32.mrf.mxu0
    %v232 = vadd.f32 %v195, %v231
    %v233 = vpop.f32.mrf.mxu0
    %v234 = vadd.f32 %v197, %v233
    %235 = vdwg.mxu0
    %v236 = vld [vmem:[%s1 + $0x20] sm:$0xf]
    %v237 = vld [vmem:[%s1 + $0x24] sm:$0xf]
    %v238 = vld [vmem:[%s1 + $0x28] sm:$0xf]
    %v239 = vld [vmem:[%s1 + $0x2c] sm:$0xf]
    %v244 = vunpack.c.l.b16 %v236
    %v245 = vunpack.c.l.b16 %v237
    %v246 = vunpack.c.l.b16 %v238
    %v247 = vunpack.c.l.b16 %v239
    %v248 = vpack.c.b16 %v245, %v244
    %v249 = vpack.c.b16 %v247, %v246
    %v253 = vsel %vm173, %v151, 0
    %v256 = vsel %vm173, %v152, 0
    %258 = vmatpush.bf16.msra.mxu0 0
    %259 = vmatpush.bf16.msra.mxu0 0
    %260 = vmatpush.bf16.msra.mxu0 0
    %261 = vmatpush.bf16.msra.mxu0 0
    %262 = vmatpush.bf16.msra.mxu0 0
    %263 = vmatpush.bf16.msra.mxu0 0
    %264 = vmatpush.bf16.msra.mxu0 %v249
    %265 = vmatpush.bf16.msra.mxu0 %v248
    %266 = vmatmul.bf16.gmra.mxu0 %v253
    %v267 = vpop.f32.mrf.mxu0
    %v268 = vadd.f32 0.0, %v267
    %v269 = vpop.f32.mrf.mxu0
    %v270 = vadd.f32 0.0, %v269
    %271 = vmatmul.bf16.gmra.mxu0 %v256
    %v272 = vpop.f32.mrf.mxu0
    %v273 = vadd.f32 0.0, %v272
    %v274 = vpop.f32.mrf.mxu0
    %v275 = vadd.f32 0.0, %v274
    %276 = vdwg.mxu0
    %v277 = vadd.f32 %v227, %v268
    %v278 = vadd.f32 %v229, %v270
    %v279 = vadd.f32 %v232, %v273
    %v280 = vadd.f32 %v234, %v275
    %v281 = vld [vmem:[%s2] sm:$0x1]
    %v283 = vperm.slane %v281, 0
    %v285 = vadd.f32 %v277, %v283
    %v286 = vadd.f32 %v278, %v283
    %v287 = vadd.f32 %v279, %v283
    %v288 = vadd.f32 %v280, %v283
    %v289 = vmax.f32 %v285, 0.0
    %v290 = vmax.f32 %v286, 0.0
    %v291 = vmax.f32 %v287, 0.0
    %v292 = vmax.f32 %v288, 0.0
    %v293 = vsel %vm173, %v289, 0.0
    %294 = vadd.xlane.f32.xlu0 %v293
    %v295 = vpop.xlane.xlu0 %294
    %v296 = vsel %vm173, %v290, 0.0
    %297 = vadd.xlane.f32.xlu0 %v296
    %v298 = vpop.xlane.xlu0 %297
    %v299 = vsel %vm173, %v291, 0.0
    %300 = vadd.xlane.f32.xlu0 %v299
    %v301 = vpop.xlane.xlu0 %300
    %v302 = vsel %vm173, %v292, 0.0
    %303 = vadd.xlane.f32.xlu0 %v302
    %v304 = vpop.xlane.xlu0 %303
    %v305 = vmul.f32 %v295, 0.03125
    %v306 = vmul.f32 %v298, 0.03125
    %v307 = vmul.f32 %v301, 0.03125
    %v308 = vmul.f32 %v304, 0.03125
    %v309 = vmul.f32 %v289, %v289
    %v310 = vmul.f32 %v290, %v290
    %v311 = vmul.f32 %v291, %v291
    %v312 = vmul.f32 %v292, %v292
    %v313 = vsel %vm173, %v309, 0.0
    %314 = vadd.xlane.f32.xlu0 %v313
    %v315 = vpop.xlane.xlu0 %314
    %v316 = vsel %vm173, %v310, 0.0
    %317 = vadd.xlane.f32.xlu0 %v316
    %v318 = vpop.xlane.xlu0 %317
    %v319 = vsel %vm173, %v311, 0.0
    %320 = vadd.xlane.f32.xlu0 %v319
    %v321 = vpop.xlane.xlu0 %320
    %v322 = vsel %vm173, %v312, 0.0
    %323 = vadd.xlane.f32.xlu0 %v322
    %v324 = vpop.xlane.xlu0 %323
    %v325 = vmul.f32 %v315, 0.03125
    %v326 = vmul.f32 %v318, 0.03125
    %v327 = vmul.f32 %v321, 0.03125
    %v328 = vmul.f32 %v324, 0.03125
    %v329 = vmul.f32 %v305, %v305
    %v330 = vmul.f32 %v306, %v306
    %v331 = vmul.f32 %v307, %v307
    %v332 = vmul.f32 %v308, %v308
    %v333 = vsub.f32 %v325, %v329
    %v334 = vsub.f32 %v326, %v330
    %v335 = vsub.f32 %v327, %v331
    %v336 = vsub.f32 %v328, %v332
    %v337 = vsub.f32 %v289, %v305
    %v338 = vsub.f32 %v290, %v306
    %v339 = vsub.f32 %v291, %v307
    %v340 = vsub.f32 %v292, %v308
    %v341 = vadd.f32 %v333, 1e-05
    %v342 = vadd.f32 %v334, 1e-05
    %v343 = vadd.f32 %v335, 1e-05
    %v344 = vadd.f32 %v336, 1e-05
    %v345 = vrsqrt.pop %v341
    %v346 = vmul.f32 %v345, %v341
    %v347 = vmul.f32 %v346, %v345
    %v348 = vmul.f32 0.5, %v347
    %v349 = vsub.f32 1.5, %v348
    %v350 = vmul.f32 %v345, %v349
    %vm351 = vweird.f32 %v341
    %vm352 = vweird.f32 %v345
    %vm353 = vmor %vm351, %vm352
    %v354 = vsel %vm353, %v345, %v350
    %v355 = vrsqrt.pop %v342
    %v356 = vmul.f32 %v355, %v342
    %v357 = vmul.f32 %v356, %v355
    %v358 = vmul.f32 0.5, %v357
    %v359 = vsub.f32 1.5, %v358
    %v360 = vmul.f32 %v355, %v359
    %vm361 = vweird.f32 %v342
    %vm362 = vweird.f32 %v355
    %vm363 = vmor %vm361, %vm362
    %v364 = vsel %vm363, %v355, %v360
    %v365 = vrsqrt.pop %v343
    %v366 = vmul.f32 %v365, %v343
    %v367 = vmul.f32 %v366, %v365
    %v368 = vmul.f32 0.5, %v367
    %v369 = vsub.f32 1.5, %v368
    %v370 = vmul.f32 %v365, %v369
    %vm371 = vweird.f32 %v343
    %vm372 = vweird.f32 %v365
    %vm373 = vmor %vm371, %vm372
    %v374 = vsel %vm373, %v365, %v370
    %v375 = vrsqrt.pop %v344
    %v376 = vmul.f32 %v375, %v344
    %v377 = vmul.f32 %v376, %v375
    %v378 = vmul.f32 0.5, %v377
    %v379 = vsub.f32 1.5, %v378
    %v380 = vmul.f32 %v375, %v379
    %vm381 = vweird.f32 %v344
    %vm382 = vweird.f32 %v375
    %vm383 = vmor %vm381, %vm382
    %v384 = vsel %vm383, %v375, %v380
    %v385 = vmul.f32 %v337, %v354
    %v386 = vmul.f32 %v338, %v364
    %v387 = vmul.f32 %v339, %v374
    %v388 = vmul.f32 %v340, %v384
    %v389 = vld [vmem:[%s3] sm:$0x1]
    %v391 = vperm.slane %v389, 0
    %v393 = vmul.f32 %v385, %v391
    %v394 = vmul.f32 %v386, %v391
    %v395 = vmul.f32 %v387, %v391
    %v396 = vmul.f32 %v388, %v391
    %v397 = vld [vmem:[%s4] sm:$0x1]
    %v399 = vperm.slane %v397, 0
    %v401 = vadd.f32 %v393, %v399
    %v402 = vadd.f32 %v394, %v399
    %v403 = vadd.f32 %v395, %v399
    %v404 = vadd.f32 %v396, %v399
    %v405 = vrot.slane %v401, 7
    %v406 = vrot.slane %v402, 7
    %v407 = vrot.slane %v403, 7
    %v408 = vrot.slane %v404, 7
    %v409 = vsel %vm109, %v407, %v408
    %v410 = vsel %vm109, %v406, %v407
    %v411 = vsel %vm109, %v405, %v406
    %v412 = vsel %vm109, %v408, %v405
    %v413 = vsel %vm118, %v412, 0.0
    %v414 = vsel %vm119, %v411, 0.0
    %v415 = vsel %vm120, %v410, 0.0
    %v416 = vsel %vm121, %v409, 0.0
    %v417 = vpack.c.bf16 %v414, %v413
    %v418 = vpack.c.bf16 %v416, %v415
    %v419 = vpack.c.bf16 %v402, %v401
    %v420 = vpack.c.bf16 %v404, %v403
    %v421 = vrot.slane %v401, 1
    %v422 = vrot.slane %v402, 1
    %v423 = vrot.slane %v403, 1
    %v424 = vrot.slane %v404, 1
    %v425 = vsel %vm134, %v423, %v424
    %v426 = vsel %vm134, %v422, %v423
    %v427 = vsel %vm134, %v421, %v422
    %v428 = vsel %vm134, %v424, %v421
    %v429 = vsel %vm143, %v427, 0.0
    %v430 = vsel %vm144, %v426, 0.0
    %v431 = vsel %vm145, %v425, 0.0
    %v432 = vsel %vm146, %v428, 0.0
    %v433 = vpack.c.bf16 %v430, %v429
    %v434 = vpack.c.bf16 %v432, %v431
    %v435 = vld [vmem:[%s5] sm:$0xf]
    %v436 = vld [vmem:[%s5 + $0x4] sm:$0xf]
    %v437 = vld [vmem:[%s5 + $0x8] sm:$0xf]
    %v438 = vld [vmem:[%s5 + $0xc] sm:$0xf]
    %v439 = vld [vmem:[%s5 + $0x10] sm:$0xf]
    %v440 = vld [vmem:[%s5 + $0x14] sm:$0xf]
    %v441 = vld [vmem:[%s5 + $0x18] sm:$0xf]
    %v442 = vld [vmem:[%s5 + $0x1c] sm:$0xf]
    %v447 = vunpack.c.l.b16 %v439
    %v448 = vunpack.c.l.b16 %v440
    %v449 = vunpack.c.l.b16 %v441
    %v450 = vunpack.c.l.b16 %v442
    %v451 = vpack.c.b16 %v448, %v447
    %v452 = vpack.c.b16 %v450, %v449
    %v456 = vsel %vm173, %v419, 0
    %v459 = vsel %vm173, %v420, 0
    %461 = vmatpush.bf16.msra.mxu0 0
    %462 = vmatpush.bf16.msra.mxu0 0
    %463 = vmatpush.bf16.msra.mxu0 0
    %464 = vmatpush.bf16.msra.mxu0 0
    %465 = vmatpush.bf16.msra.mxu0 0
    %466 = vmatpush.bf16.msra.mxu0 0
    %467 = vmatpush.bf16.msra.mxu0 %v452
    %468 = vmatpush.bf16.msra.mxu0 %v451
    %469 = vmatmul.bf16.gmra.mxu0 %v456
    %v470 = vpop.f32.mrf.mxu0
    %v471 = vadd.f32 0.0, %v470
    %v472 = vpop.f32.mrf.mxu0
    %v473 = vadd.f32 0.0, %v472
    %474 = vmatmul.bf16.gmra.mxu0 %v459
    %v475 = vpop.f32.mrf.mxu0
    %v476 = vadd.f32 0.0, %v475
    %v477 = vpop.f32.mrf.mxu0
    %v478 = vadd.f32 0.0, %v477
    %479 = vdwg.mxu0
    %v484 = vunpack.c.l.b16 %v435
    %v485 = vunpack.c.l.b16 %v436
    %v486 = vunpack.c.l.b16 %v437
    %v487 = vunpack.c.l.b16 %v438
    %v488 = vpack.c.b16 %v485, %v484
    %v489 = vpack.c.b16 %v487, %v486
    %v493 = vsel %vm173, %v417, 0
    %v496 = vsel %vm173, %v418, 0
    %498 = vmatpush.bf16.msra.mxu0 0
    %499 = vmatpush.bf16.msra.mxu0 0
    %500 = vmatpush.bf16.msra.mxu0 0
    %501 = vmatpush.bf16.msra.mxu0 0
    %502 = vmatpush.bf16.msra.mxu0 0
    %503 = vmatpush.bf16.msra.mxu0 0
    %504 = vmatpush.bf16.msra.mxu0 %v489
    %505 = vmatpush.bf16.msra.mxu0 %v488
    %506 = vmatmul.bf16.gmra.mxu0 %v493
    %v507 = vpop.f32.mrf.mxu0
    %v508 = vadd.f32 %v471, %v507
    %v509 = vpop.f32.mrf.mxu0
    %v510 = vadd.f32 %v473, %v509
    %511 = vmatmul.bf16.gmra.mxu0 %v496
    %v512 = vpop.f32.mrf.mxu0
    %v513 = vadd.f32 %v476, %v512
    %v514 = vpop.f32.mrf.mxu0
    %v515 = vadd.f32 %v478, %v514
    %516 = vdwg.mxu0
    %v517 = vld [vmem:[%s5 + $0x20] sm:$0xf]
    %v518 = vld [vmem:[%s5 + $0x24] sm:$0xf]
    %v519 = vld [vmem:[%s5 + $0x28] sm:$0xf]
    %v520 = vld [vmem:[%s5 + $0x2c] sm:$0xf]
    %v525 = vunpack.c.l.b16 %v517
    %v526 = vunpack.c.l.b16 %v518
    %v527 = vunpack.c.l.b16 %v519
    %v528 = vunpack.c.l.b16 %v520
    %v529 = vpack.c.b16 %v526, %v525
    %v530 = vpack.c.b16 %v528, %v527
    %v534 = vsel %vm173, %v433, 0
    %v537 = vsel %vm173, %v434, 0
    %539 = vmatpush.bf16.msra.mxu0 0
    %540 = vmatpush.bf16.msra.mxu0 0
    %541 = vmatpush.bf16.msra.mxu0 0
    %542 = vmatpush.bf16.msra.mxu0 0
    %543 = vmatpush.bf16.msra.mxu0 0
    %544 = vmatpush.bf16.msra.mxu0 0
    %545 = vmatpush.bf16.msra.mxu0 %v530
    %546 = vmatpush.bf16.msra.mxu0 %v529
    %547 = vmatmul.bf16.gmra.mxu0 %v534
    %v548 = vpop.f32.mrf.mxu0
    %v549 = vadd.f32 0.0, %v548
    %v550 = vpop.f32.mrf.mxu0
    %v551 = vadd.f32 0.0, %v550
    %552 = vmatmul.bf16.gmra.mxu0 %v537
    %v553 = vpop.f32.mrf.mxu0
    %v554 = vadd.f32 0.0, %v553
    %v555 = vpop.f32.mrf.mxu0
    %v556 = vadd.f32 0.0, %v555
    %557 = vdwg.mxu0
    %v558 = vadd.f32 %v508, %v549
    %v559 = vadd.f32 %v510, %v551
    %v560 = vadd.f32 %v513, %v554
    %v561 = vadd.f32 %v515, %v556
    %v562 = vld [vmem:[%s6] sm:$0x1]
    %v564 = vperm.slane %v562, 0
    %v566 = vadd.f32 %v558, %v564
    %v567 = vadd.f32 %v559, %v564
    %v568 = vadd.f32 %v560, %v564
    %v569 = vadd.f32 %v561, %v564
    %v570 = vmax.f32 %v566, 0.0
    %v571 = vmax.f32 %v567, 0.0
    %v572 = vmax.f32 %v568, 0.0
    %v573 = vmax.f32 %v569, 0.0
    %v574 = vsel %vm173, %v570, 0.0
    %575 = vadd.xlane.f32.xlu0 %v574
    %v576 = vpop.xlane.xlu0 %575
    %v577 = vsel %vm173, %v571, 0.0
    %578 = vadd.xlane.f32.xlu0 %v577
    %v579 = vpop.xlane.xlu0 %578
    %v580 = vsel %vm173, %v572, 0.0
    %581 = vadd.xlane.f32.xlu0 %v580
    %v582 = vpop.xlane.xlu0 %581
    %v583 = vsel %vm173, %v573, 0.0
    %584 = vadd.xlane.f32.xlu0 %v583
    %v585 = vpop.xlane.xlu0 %584
    %v586 = vmul.f32 %v576, 0.03125
    %v587 = vmul.f32 %v579, 0.03125
    %v588 = vmul.f32 %v582, 0.03125
    %v589 = vmul.f32 %v585, 0.03125
    %v590 = vmul.f32 %v570, %v570
    %v591 = vmul.f32 %v571, %v571
    %v592 = vmul.f32 %v572, %v572
    %v593 = vmul.f32 %v573, %v573
    %v594 = vsel %vm173, %v590, 0.0
    %595 = vadd.xlane.f32.xlu0 %v594
    %v596 = vpop.xlane.xlu0 %595
    %v597 = vsel %vm173, %v591, 0.0
    %598 = vadd.xlane.f32.xlu0 %v597
    %v599 = vpop.xlane.xlu0 %598
    %v600 = vsel %vm173, %v592, 0.0
    %601 = vadd.xlane.f32.xlu0 %v600
    %v602 = vpop.xlane.xlu0 %601
    %v603 = vsel %vm173, %v593, 0.0
    %604 = vadd.xlane.f32.xlu0 %v603
    %v605 = vpop.xlane.xlu0 %604
    %v606 = vmul.f32 %v596, 0.03125
    %v607 = vmul.f32 %v599, 0.03125
    %v608 = vmul.f32 %v602, 0.03125
    %v609 = vmul.f32 %v605, 0.03125
    %v610 = vmul.f32 %v586, %v586
    %v611 = vmul.f32 %v587, %v587
    %v612 = vmul.f32 %v588, %v588
    %v613 = vmul.f32 %v589, %v589
    %v614 = vsub.f32 %v606, %v610
    %v615 = vsub.f32 %v607, %v611
    %v616 = vsub.f32 %v608, %v612
    %v617 = vsub.f32 %v609, %v613
    %v618 = vld [vmem:[%s7] sm:$0x1]
    %vm619 = vcmask 253952
    %v620 = vsel %vm619, %v618, 0.0
    %621 = vadd.xlane.f32.xlu0 %v620
    %v622 = vpop.xlane.xlu0 %621
    %v624 = vperm.slane %v618, 0
    %v626 = vmul.f32 %v570, %v624
    %v627 = vmul.f32 %v571, %v624
    %v628 = vmul.f32 %v572, %v624
    %v629 = vmul.f32 %v573, %v624
    %v630 = vsel %vm173, %v626, 0.0
    %631 = vadd.xlane.f32.xlu0 %v630
    %v632 = vpop.xlane.xlu0 %631
    %v633 = vsel %vm173, %v627, 0.0
    %634 = vadd.xlane.f32.xlu0 %v633
    %v635 = vpop.xlane.xlu0 %634
    %v636 = vsel %vm173, %v628, 0.0
    %637 = vadd.xlane.f32.xlu0 %v636
    %v638 = vpop.xlane.xlu0 %637
    %v639 = vsel %vm173, %v629, 0.0
    %640 = vadd.xlane.f32.xlu0 %v639
    %v641 = vpop.xlane.xlu0 %640
    %v642 = vadd.f32 %v614, 1e-05
    %v643 = vadd.f32 %v615, 1e-05
    %v644 = vadd.f32 %v616, 1e-05
    %v645 = vadd.f32 %v617, 1e-05
    %v646 = vrsqrt.pop %v642
    %v647 = vmul.f32 %v646, %v642
    %v648 = vmul.f32 %v647, %v646
    %v649 = vmul.f32 0.5, %v648
    %v650 = vsub.f32 1.5, %v649
    %v651 = vmul.f32 %v646, %v650
    %vm652 = vweird.f32 %v642
    %vm653 = vweird.f32 %v646
    %vm654 = vmor %vm652, %vm653
    %v655 = vsel %vm654, %v646, %v651
    %v656 = vrsqrt.pop %v643
    %v657 = vmul.f32 %v656, %v643
    %v658 = vmul.f32 %v657, %v656
    %v659 = vmul.f32 0.5, %v658
    %v660 = vsub.f32 1.5, %v659
    %v661 = vmul.f32 %v656, %v660
    %vm662 = vweird.f32 %v643
    %vm663 = vweird.f32 %v656
    %vm664 = vmor %vm662, %vm663
    %v665 = vsel %vm664, %v656, %v661
    %v666 = vrsqrt.pop %v644
    %v667 = vmul.f32 %v666, %v644
    %v668 = vmul.f32 %v667, %v666
    %v669 = vmul.f32 0.5, %v668
    %v670 = vsub.f32 1.5, %v669
    %v671 = vmul.f32 %v666, %v670
    %vm672 = vweird.f32 %v644
    %vm673 = vweird.f32 %v666
    %vm674 = vmor %vm672, %vm673
    %v675 = vsel %vm674, %v666, %v671
    %v676 = vrsqrt.pop %v645
    %v677 = vmul.f32 %v676, %v645
    %v678 = vmul.f32 %v677, %v676
    %v679 = vmul.f32 0.5, %v678
    %v680 = vsub.f32 1.5, %v679
    %v681 = vmul.f32 %v676, %v680
    %vm682 = vweird.f32 %v645
    %vm683 = vweird.f32 %v676
    %vm684 = vmor %vm682, %vm683
    %v685 = vsel %vm684, %v676, %v681
    %v686 = vperm.slane %v622, 0
    %v687 = vmul.f32 %v586, %v686
    %v688 = vmul.f32 %v587, %v686
    %v689 = vmul.f32 %v588, %v686
    %v690 = vmul.f32 %v589, %v686
    %v691 = vsub.f32 %v632, %v687
    %v692 = vsub.f32 %v635, %v688
    %v693 = vsub.f32 %v638, %v689
    %v694 = vsub.f32 %v641, %v690
    %v695 = vmul.f32 %v655, %v691
    %v696 = vmul.f32 %v665, %v692
    %v697 = vmul.f32 %v675, %v693
    %v698 = vmul.f32 %v685, %v694
    %s699 = sld [smem:[#allocation2]]
    %v700 = vstv %s699
    %v701 = vadd.f32 %v695, %v700
    %v702 = vadd.f32 %v696, %v700
    %v703 = vadd.f32 %v697, %v700
    %v704 = vadd.f32 %v698, %v700
    %v705 = vmul.f32 %v701, 6.685861
    %v706 = vmul.f32 %v702, 6.685861
    %v707 = vmul.f32 %v703, 6.685861
    %v708 = vmul.f32 %v704, 6.685861
    %v709 = vmin.f32 %v705, 80.0
    %v710 = vmin.f32 %v706, 80.0
    %v711 = vmin.f32 %v707, 80.0
    %v712 = vmin.f32 %v708, 80.0
    %v713 = vmul.f32 %v709, 1.442695
    %v714 = vpow.pop %v713
    %v715 = vmul.f32 %v710, 1.442695
    %v716 = vpow.pop %v715
    %v717 = vmul.f32 %v711, 1.442695
    %v718 = vpow.pop %v717
    %v719 = vmul.f32 %v712, 1.442695
    %v720 = vpow.pop %v719
    %v721 = vsub.f32 %v714, 1.0
    %v722 = vsub.f32 %v716, 1.0
    %v723 = vsub.f32 %v718, 1.0
    %v724 = vsub.f32 %v720, 1.0
    %v725 = vadd.f32 %v721, 1.0
    %v726 = vlog2.pop %v725
    %v727 = vmul.f32 %v726, 0.6931472
    %v728 = vmul.f32 -0.5, %v721
    %v729 = vadd.f32 %v728, 1.0
    %v730 = vmul.f32 %v729, %v721
    %v731 = vand.u32 2147483647, %v721
    %vm732 = vcmp.lt.f32.partialorder %v731, 0.0004427343
    %v733 = vsel %vm732, %v730, %v727
    %v734 = vadd.f32 %v722, 1.0
    %v735 = vlog2.pop %v734
    %v736 = vmul.f32 %v735, 0.6931472
    %v737 = vmul.f32 -0.5, %v722
    %v738 = vadd.f32 %v737, 1.0
    %v739 = vmul.f32 %v738, %v722
    %v740 = vand.u32 2147483647, %v722
    %vm741 = vcmp.lt.f32.partialorder %v740, 0.0004427343
    %v742 = vsel %vm741, %v739, %v736
    %v743 = vadd.f32 %v723, 1.0
    %v744 = vlog2.pop %v743
    %v745 = vmul.f32 %v744, 0.6931472
    %v746 = vmul.f32 -0.5, %v723
    %v747 = vadd.f32 %v746, 1.0
    %v748 = vmul.f32 %v747, %v723
    %v749 = vand.u32 2147483647, %v723
    %vm750 = vcmp.lt.f32.partialorder %v749, 0.0004427343
    %v751 = vsel %vm750, %v748, %v745
    %v752 = vadd.f32 %v724, 1.0
    %v753 = vlog2.pop %v752
    %v754 = vmul.f32 %v753, 0.6931472
    %v755 = vmul.f32 -0.5, %v724
    %v756 = vadd.f32 %v755, 1.0
    %v757 = vmul.f32 %v756, %v724
    %v758 = vand.u32 2147483647, %v724
    %vm759 = vcmp.lt.f32.partialorder %v758, 0.0004427343
    %v760 = vsel %vm759, %v757, %v754
    %v761 = vrcp.pop 6.685861
    %v762 = vmul.f32 6.685861, %v761
    %v763 = vsub.f32 1.0, %v762
    %v764 = vmul.f32 %v761, %v763
    %v765 = vadd.f32 %v761, %v764
    %vm766 = vweird.f32 %v761
    %v767 = vsel %vm766, %v761, %v765
    %v768 = vmul.f32 %v733, %v767
    %v769 = vmul.f32 %v742, %v767
    %v770 = vmul.f32 %v751, %v767
    %v771 = vmul.f32 %v760, %v767
    %v772 = vmax.f32 %v768, 0.0
    %v773 = vmax.f32 %v769, 0.0
    %v774 = vmax.f32 %v770, 0.0
    %v775 = vmax.f32 %v771, 0.0
    %v776 = vmin.f32 %v772, 1.0
    %v777 = vmin.f32 %v773, 1.0
    %v778 = vmin.f32 %v774, 1.0
    %v779 = vmin.f32 %v775, 1.0
    %v780 = vmul.f32 %v776, 15.0
    %v781 = vmul.f32 %v777, 15.0
    %v782 = vmul.f32 %v778, 15.0
    %v783 = vmul.f32 %v779, 15.0
    %v784 = vceil.f32 %v780
    %v785 = vceil.f32 %v781
    %v786 = vceil.f32 %v782
    %v787 = vceil.f32 %v783
    %v788 = vmax.f32 %v784, 0.0
    %v789 = vmax.f32 %v785, 0.0
    %v790 = vmax.f32 %v786, 0.0
    %v791 = vmax.f32 %v787, 0.0
    %v792 = vmin.f32 %v788, 15.0
    %v793 = vmin.f32 %v789, 15.0
    %v794 = vmin.f32 %v790, 15.0
    %v795 = vmin.f32 %v791, 15.0
    %v796 = vcvt.f32.s32.to.zero.pseudo %v792
    %v797 = vcvt.f32.s32.to.zero.pseudo %v793
    %v798 = vcvt.f32.s32.to.zero.pseudo %v794
    %v799 = vcvt.f32.s32.to.zero.pseudo %v795
    %v800 = vlaneseq
    %v801 = vand.u32 %v800, 127
    %vm802 = vcmp.eq.s32.totalorder %v801, %v796
    %vm803 = vcmp.eq.s32.totalorder %v801, %v797
    %vm804 = vcmp.eq.s32.totalorder %v801, %v798
    %vm805 = vcmp.eq.s32.totalorder %v801, %v799
    %v806 = vsel %vm802, 1, 0
    %v807 = vsel %vm803, 1, 0
    %v808 = vsel %vm804, 1, 0
    %v809 = vsel %vm805, 1, 0
    %v810 = vcvt.s32.f32 %v806
    %v811 = vcvt.s32.f32 %v807
    %v812 = vcvt.s32.f32 %v808
    %v813 = vcvt.s32.f32 %v809
    %v814 = vpack.c.bf16 %v811, %v810
    %v815 = vpack.c.bf16 %v813, %v812
    %v816 = vld [vmem:[%s8] sm:$0xf]
    %v817 = vld [vmem:[%s8 + $0x4] sm:$0xf]
    %v820 = vunpack.c.l.b16 %v816
    %v821 = vunpack.c.l.b16 %v817
    %v822 = vpack.c.b16 %v821, %v820
    %vm824 = vcmask 130048
    %v826 = vsel %vm824, %v814, 0
    %v829 = vsel %vm824, %v815, 0
    %831 = vmatpush.bf16.msra.mxu0 0
    %832 = vmatpush.bf16.msra.mxu0 0
    %833 = vmatpush.bf16.msra.mxu0 0
    %834 = vmatpush.bf16.msra.mxu0 0
    %835 = vmatpush.bf16.msra.mxu0 0
    %836 = vmatpush.bf16.msra.mxu0 0
    %837 = vmatpush.bf16.msra.mxu0 0
    %838 = vmatpush.bf16.msra.mxu0 %v822
    %839 = vmatmul.bf16.gmra.mxu0 %v826
    %v840 = vpop.f32.mrf.mxu0
    %v841 = vadd.f32 0.0, %v840
    %v842 = vpop.f32.mrf.mxu0
    %v843 = vadd.f32 0.0, %v842
    %844 = vmatmul.bf16.gmra.mxu0 %v829
    %v845 = vpop.f32.mrf.mxu0
    %v846 = vadd.f32 0.0, %v845
    %v847 = vpop.f32.mrf.mxu0
    %v848 = vadd.f32 0.0, %v847
    %849 = vdwg.mxu0
    %v850 = vadd.f32 %v40, %v841
    %v851 = vadd.f32 %v41, %v843
    %v852 = vadd.f32 %v42, %v846
    %v853 = vadd.f32 %v43, %v848
    %854 = vst.msk [vmem:[#allocation3] sm:$0xff] %vm173, %v850
    %855 = vst.msk [vmem:[#allocation3 + $0x8] sm:$0xff] %vm173, %v851
    %856 = vst.msk [vmem:[#allocation3 + $0x10] sm:$0xff] %vm173, %v852
    %857 = vst.msk [vmem:[#allocation3 + $0x18] sm:$0xff] %vm173, %v853
    %vm858 = vcmask 7168
    %859 = vst.msk [vmem:[%s11] sm:$0xff] %vm858, %v701
    %860 = vst.msk [vmem:[%s11 + $0x8] sm:$0xff] %vm858, %v702
    %861 = vst.msk [vmem:[%s11 + $0x10] sm:$0xff] %vm858, %v703
    %862 = vst.msk [vmem:[%s11 + $0x18] sm:$0xff] %vm858, %v704
    // Predicated region
    $region42: #{tpu_custom_call.1} parent=1 // pred_check
      _
    $region43: #{tpu_custom_call.1} parent=1 // pred_check_branch
      %864 = sbr.rel (0) target = $region45
    $region44: #{tpu_custom_call.1} parent=1 // pred_region
      %866 = vsyncadd [#allocation4], 0
      %s867 = sshll.u32 [#allocation3], 4
      %s868 = int_to_ptr.vmem [resolvable:$true] %s867
      %s869 = sshll.u32 %s10, 4
      %s870 = int_to_ptr.hbm [resolvable:$true] %s869
      %875 = dma.vmem_to_hbm [thread:$0]  %s868, 512, %s870, [#allocation4], 128, 128, 8
    $region45: #{tpu_custom_call.1} parent=1 // pred_fallthru
      _
    // Predicated region
    $region46: #{tpu_custom_call.1} parent=1 // pred_check
      _
    $region47: #{tpu_custom_call.1} parent=1 // pred_check_branch
      %877 = sbr.rel (0) target = $region49
    $region48: #{tpu_custom_call.1} parent=1 // pred_region
      _
    $region49: #{tpu_custom_call.1} parent=1 // pred_fallthru
      _
    // Predicated region
    $region50: #{tpu_custom_call.1} parent=1 // pred_check
      _
    $region51: #{tpu_custom_call.1} parent=1 // pred_check_branch
      %879 = sbr.rel (0) target = $region53
    $region52: #{tpu_custom_call.1} parent=1 // pred_region
      %881 = dma.done [#allocation4], 512
    $region53: #{tpu_custom_call.1} parent=1 // pred_fallthru
      _
    // Predicated region
    $region54: #{tpu_custom_call.1} parent=1 // pred_check
      _
    $region55: #{tpu_custom_call.1} parent=1 // pred_check_branch
      %883 = sbr.rel (0) target = $region57
    $region56: #{tpu_custom_call.1} parent=1 // pred_region
      _
    $region57: #{tpu_custom_call.1} parent=1 // pred_fallthru
      _
    %884 = vsyncpa [#allocation4], 1

</llo_original>
